<compile_context>
chip_gen: v7x
topology: tpu7x:2x2x1
jax: 0.10.0
libtpu: 0.0.40
codegen_flags: <defaults>
</compile_context>

<pallas_src>
import jax
import jax.numpy as jnp
import numpy as np
from jax.experimental import pallas as pl
from jax.experimental.pallas import tpu as pltpu


# The module takes `act` as a constructor argument; we choose tanh-approx GELU.
def act(z):
    return jax.nn.gelu(z, approximate=True)


def _round_up(x, m):
    return ((x + m - 1) // m) * m


def _vmem_cap_bytes():
    try:
        cap = getattr(pltpu.get_tpu_info(), "vmem_capacity_bytes", None)
        if cap:
            return int(cap)
    except Exception:
        pass
    return 64 << 20  # conservative (v7x-sized) fallback


def _spec(shape, index_map, single_buffer=False):
    # Constant-index blocks only need one pipeline buffer; fall back silently if
    # pipeline_mode / pl.Buffered is unavailable in this JAX version.
    if single_buffer and hasattr(pl, "Buffered"):
        try:
            return pl.BlockSpec(shape, index_map, pipeline_mode=pl.Buffered(1))
        except TypeError:
            pass
    return pl.BlockSpec(shape, index_map)


# ----------------------------- Pallas kernels --------------------------------
def _make_resident_kernel(has_res):
    """Whole-width resident weights: one grid axis over token tiles."""
    def kernel(*refs):
        if has_res:
            x_ref, w1_ref, b1_ref, w2_ref, b2_ref, res_ref, o_ref = refs
        else:
            x_ref, w1_ref, b1_ref, w2_ref, b2_ref, o_ref = refs
            res_ref = None
        # bf16 MXU operands, f32 accumulation; bias + GELU in f32 (v5e-safe).
        h = jnp.dot(x_ref[...].astype(w1_ref.dtype), w1_ref[...],
                    preferred_element_type=jnp.float32)
        h = act(h + b1_ref[...])
        y = jnp.dot(h.astype(w2_ref.dtype), w2_ref[...],
                    preferred_element_type=jnp.float32)
        y = y + b2_ref[...]
        if has_res:
            y = y + res_ref[...].astype(jnp.float32)   # fused residual
        o_ref[...] = y.astype(o_ref.dtype)
    return kernel


def _make_htile_kernel(has_res):
    """Hidden-dim tiled path: grid = (token tiles, hidden tiles); f32 accumulator."""
    def kernel(*refs):
        if has_res:
            x_ref, w1_ref, b1_ref, w2_ref, b2_ref, res_ref, o_ref, acc_ref = refs
        else:
            x_ref, w1_ref, b1_ref, w2_ref, b2_ref, o_ref, acc_ref = refs
            res_ref = None
        k = pl.program_id(1)

        @pl.when(k == 0)
        def _():
            acc_ref[...] = jnp.zeros_like(acc_ref)

        h = jnp.dot(x_ref[...].astype(w1_ref.dtype), w1_ref[...],
                    preferred_element_type=jnp.float32)
        h = act(h + b1_ref[...])
        acc_ref[...] += jnp.dot(h.astype(w2_ref.dtype), w2_ref[...],
                                preferred_element_type=jnp.float32)

        @pl.when(k == pl.num_programs(1) - 1)
        def _():
            y = acc_ref[...] + b2_ref[...]
            if has_res:
                y = y + res_ref[...].astype(jnp.float32)
            o_ref[...] = y.astype(o_ref.dtype)
    return kernel


# ------------------------------- wrapper --------------------------------------
def kn_mlp_forward(x, w1_eff, b1, w2_eff, b2_eff, residual=None, *,
                   tm=512, t_hid=None, out_dtype=None, force_hidden_tiling=False):
    """x: (B, S, d_in); returns (B, S, d_in) in out_dtype (default: x.dtype)."""
    Bsz, S, d_in = x.shape
    d_hid = w1_eff.shape[1]
    T = Bsz * S
    out_dtype = jnp.dtype(x.dtype if out_dtype is None else out_dtype)

    has_res = residual is not None
    x_b = jnp.dtype(x.dtype).itemsize
    o_b = out_dtype.itemsize
    r_b = jnp.dtype(residual.dtype).itemsize if has_res else 0

    # Lane-dense feature dim only when the padding overhead is <= 25%; tiny widths
    # stay unpadded (block last dim == full array dim) to avoid 8x streamed HBM.
    d_in_128 = _round_up(d_in, 128)
    d_in_p = d_in_128 if (d_in_128 - d_in) * 4 <= d_in else d_in
    d_hid_128 = _round_up(d_hid, 128)

    # Token tile: multiple of 8, and >= 2 grid steps when possible so v7x's two
    # TensorCores both get work (one extra ~0.35us grid step on v5e/v6e is noise).
    tm_eff = min(tm, _round_up(T, 8))
    if T >= 16:
        tm_eff = min(tm_eff, _round_up((T + 1) // 2, 8))
    T_p = _round_up(T, tm_eff)

    budget = int(0.8 * _vmem_cap_bytes())     # generation-aware VMEM budget
    headroom = 4 << 20

    def resident_vmem(tm_, dh):
        return (2 * tm_ * d_in_p * (x_b + o_b + r_b)      # double-buffered token tiles
                + 2 * d_in_p * dh * 2                     # W1+W2 bf16, single-buffered
                + (dh + d_in_p) * 4                       # biases (f32)
                + tm_ * (dh + d_in_p) * 4)                # f32 h / y temporaries

    def htile_vmem(tm_, th):
        return (2 * tm_ * d_in_p * (x_b + o_b + r_b)
                + 2 * 2 * d_in_p * th * 2                 # W1/W2 tiles, double-buffered
                + (2 * th + d_in_p) * 4                   # bias tiles
                + tm_ * d_in_p * 4                        # f32 accumulator scratch
                + tm_ * th * 4)                           # f32 h temporary

    d_hid_res = d_hid_128 if (d_hid_128 - d_hid) * 4 <= d_hid else d_hid
    use_htile = force_hidden_tiling or (
        resident_vmem(tm_eff, d_hid_res) + headroom > budget)

    if use_htile:
        if t_hid is None:
            cands = [c for c in (2048, 1024, 512, 256, 128) if c <= d_hid_128]
            t_hid = next(
                (c for c in cands if htile_vmem(tm_eff, c) + headroom <= budget), 128)
        t_hid = max(128, _round_up(int(t_hid), 128))
        while htile_vmem(tm_eff, t_hid) + headroom > budget and tm_eff > 8:
            tm_eff = max(8, _round_up(tm_eff // 2, 8))
            T_p = _round_up(T, tm_eff)
        d_hid_use = _round_up(d_hid, t_hid)
        vmem_need = htile_vmem(tm_eff, t_hid)
    else:
        d_hid_use = d_hid_res
        vmem_need = resident_vmem(tm_eff, d_hid_use)

    # --- operand staging: pad only when actually required; no wrapper-side astype
    # of activations (the bf16 cast happens inside the kernel). Zero padding is
    # exact: padded x cols hit zero W1 rows, padded hidden units give gelu(0+0)=0
    # into zero W2 rows, padded out cols / token rows are sliced off below. ---
    bf16, f32 = jnp.bfloat16, jnp.float32
    x2d = x.reshape(T, d_in)
    if (T_p, d_in_p) != (T, d_in):
        x2d = jnp.pad(x2d, ((0, T_p - T), (0, d_in_p - d_in)))
    res2d = None
    if has_res:
        res2d = residual.reshape(T, d_in)
        if (T_p, d_in_p) != (T, d_in):
            res2d = jnp.pad(res2d, ((0, T_p - T), (0, d_in_p - d_in)))

    w1_p = w1_eff.astype(bf16)
    w2_p = w2_eff.astype(bf16)
    if (d_in_p, d_hid_use) != (d_in, d_hid):
        w1_p = jnp.pad(w1_p, ((0, d_in_p - d_in), (0, d_hid_use - d_hid)))
        w2_p = jnp.pad(w2_p, ((0, d_hid_use - d_hid), (0, d_in_p - d_in)))
    b1_p = b1.astype(f32)
    if d_hid_use != d_hid:
        b1_p = jnp.pad(b1_p, (0, d_hid_use - d_hid))
    b1_p = b1_p.reshape(1, d_hid_use)
    b2_p = b2_eff.astype(f32)
    if d_in_p != d_in:
        b2_p = jnp.pad(b2_p, (0, d_in_p - d_in))
    b2_p = b2_p.reshape(1, d_in_p)

    cost = pl.CostEstimate(
        flops=2 * 2 * T_p * d_in_p * d_hid_use,
        transcendentals=T_p * d_hid_use,
        bytes_accessed=(T_p * d_in_p * (x_b + o_b + r_b)
                        + 2 * d_in_p * d_hid_use * 2
                        + (d_hid_use + d_in_p) * 4),
    )

    def _call(single_buffer_weights):
        extra = 0
        if not single_buffer_weights and not use_htile:
            extra = 2 * d_in_p * d_hid_use * 2     # second buffer for bf16 W1+W2
        vmem_limit = int(min(max(vmem_need + extra + headroom, 32 << 20),
                             max(budget, 32 << 20)))
        if use_htile:
            kernel = _make_htile_kernel(has_res)
            grid = (T_p // tm_eff, d_hid_use // t_hid)
            tok_map = lambda i, k: (i, 0)
            in_specs = [
                pl.BlockSpec((tm_eff, d_in_p), tok_map),            # x (resident over k)
                pl.BlockSpec((d_in_p, t_hid), lambda i, k: (0, k)),  # W1 tile
                pl.BlockSpec((1, t_hid), lambda i, k: (0, k)),       # b1 tile
                pl.BlockSpec((t_hid, d_in_p), lambda i, k: (k, 0)),  # W2 tile
                _spec((1, d_in_p), lambda i, k: (0, 0), single_buffer_weights),  # b2
            ]
            scratch = [pltpu.VMEM((tm_eff, d_in_p), jnp.float32)]    # f32 accumulator
            dims = ("parallel", "arbitrary")
        else:
            kernel = _make_resident_kernel(has_res)
            grid = (T_p // tm_eff,)
            tok_map = lambda i: (i, 0)
            const_map = lambda i: (0, 0)
            in_specs = [
                pl.BlockSpec((tm_eff, d_in_p), tok_map),                          # x tile
                _spec((d_in_p, d_hid_use), const_map, single_buffer_weights),     # W1
                _spec((1, d_hid_use), const_map, single_buffer_weights),          # b1
                _spec((d_hid_use, d_in_p), const_map, single_buffer_weights),     # W2
                _spec((1, d_in_p), const_map, single_buffer_weights),             # b2
            ]
            scratch = []
            dims = ("parallel",)
        args = [x2d, w1_p, b1_p, w2_p, b2_p]
        if has_res:
            in_specs.append(pl.BlockSpec((tm_eff, d_in_p), tok_map))  # fused residual
            args.append(res2d)
        return pl.pallas_call(
            kernel,
            out_shape=jax.ShapeDtypeStruct((T_p, d_in_p), out_dtype),
            grid=grid,
            in_specs=in_specs,
            out_specs=pl.BlockSpec((tm_eff, d_in_p), tok_map),
            scratch_shapes=scratch,
            compiler_params=pltpu.CompilerParams(
                dimension_semantics=dims,
                vmem_limit_bytes=vmem_limit),
            cost_estimate=cost,
        )(*args)

    try:
        out2d = _call(True)           # single-buffered constant weight blocks
    except Exception:
        out2d = _call(False)          # fallback: default double-buffering

    if (T_p, d_in_p) != (T, d_in):
        out2d = out2d[:T, :d_in]
    return out2d.reshape(Bsz, S, d_in)


# ------------------------- parameter setup (glue) ---------------------------
def build_effective_weights(A1, B1, A2, B2, b1, b2, p, q, m1, n1, m2, n2):
    # W1[(m1i,m2i),(n1i,n2i)] = sum_r A1[r,n1i,m1i] * B1[r,m2i,n2i]
    W1 = jnp.einsum("rnm,rkj->mknj", A1, B1).reshape(m1 * m2, n1 * n2)
    # W2[(n1i,n2i),(m1i,m2i)] = sum_r A2[r,m1i,n1i] * B2[r,n2i,m2i]
    W2 = jnp.einsum("rmn,rjk->njmk", A2, B2).reshape(n1 * n2, m1 * m2)
    # fold x[..., p_inv] into W1 rows, and out[..., q] into W2 cols / b2
    return W1[p, :], b1, W2[:, q], b2[q]


# ------------------------ literal reference (pure JAX) -----------------------
def reference_forward(x, A1, B1, A2, B2, b1, b2, p_inv, q, r, m1, n1, m2, n2,
                      residual=None):
    shape = x.shape
    xp = x[:, :, p_inv].reshape(-1, m2)
    Bx = jnp.einsum("km,rmn->rkn", xp, B1)
    Bx = Bx.reshape(r, shape[0] * shape[1], m1, n2)
    ABx = jnp.einsum("rnm,rbmj->bnj", A1, Bx)
    h = act(ABx.reshape(shape[0], shape[1], n1 * n2) + b1)
    h2 = h.reshape(-1, n2)
    Bx2 = jnp.einsum("km,rmn->rkn", h2, B2)
    Bx2 = Bx2.reshape(r, shape[0] * shape[1], n1, m2)
    ABx2 = jnp.einsum("rnm,rbmj->bnj", A2, Bx2)
    out = (ABx2.reshape(shape[0], shape[1], m1 * m2) + b2)[:, :, q]
    if residual is not None:
        out = out + residual
    return out


if __name__ == "__main__":
    def make_case(ks, r, m1, n1, m2, n2, Bsz, S):
        d_in, d_hid = m1 * m2, n1 * n2
        # deterministic synthetic init (module shapes; the torch __init__ never
        # actually initializes A2/B2 — everything is initialized here explicitly)
        A1 = 0.1 * jax.random.normal(ks[0], (r, n1, m1), jnp.float32)
        B1 = 0.1 * jax.random.normal(ks[1], (r, m2, n2), jnp.float32)
        A2 = 0.1 * jax.random.normal(ks[2], (r, m1, n1), jnp.float32)
        B2 = 0.1 * jax.random.normal(ks[3], (r, n2, m2), jnp.float32)
        b1 = 0.01 * jax.random.normal(ks[4], (d_hid,), jnp.float32)
        b2 = 0.01 * jax.random.normal(ks[5], (d_in,), jnp.float32)
        p = jax.random.permutation(ks[6], d_in)
        q = jax.random.permutation(ks[7], d_in)
        p_inv = jnp.argsort(p)                   # inverse_permutation(p)
        x = jax.random.normal(ks[8], (Bsz, S, d_in), jnp.float32)
        res = 0.5 * jax.random.normal(ks[9], (Bsz, S, d_in), jnp.float32)
        W1e, b1e, W2e, b2e = build_effective_weights(
            A1, B1, A2, B2, b1, b2, p, q, m1, n1, m2, n2)
        return dict(A1=A1, B1=B1, A2=A2, B2=B2, b1=b1, b2=b2, p_inv=p_inv, q=q,
                    r=r, m1=m1, n1=n1, m2=m2, n2=n2, x=x, res=res,
                    W1e=W1e, b1e=b1e, W2e=W2e, b2e=b2e)

    def check(out, c, residual):
        ref = jax.block_until_ready(reference_forward(
            c["x"], c["A1"], c["B1"], c["A2"], c["B2"], c["b1"], c["b2"],
            c["p_inv"], c["q"], c["r"], c["m1"], c["n1"], c["m2"], c["n2"],
            residual=residual))
        out_np, ref_np = np.asarray(out), np.asarray(ref)
        assert out.shape == c["x"].shape
        # bf16 MXU operands -> loosened tolerance vs the f32 literal reference
        assert np.allclose(out_np, ref_np, rtol=5e-2, atol=5e-3), \
            float(np.abs(out_np - ref_np).max())

    # --- case 1: module-spec sized config (nx=16, nf=32) -> resident-weight path ---
    c1 = make_case(jax.random.split(jax.random.PRNGKey(0), 10),
                   r=2, m1=4, n1=4, m2=4, n2=8, Bsz=2, S=8)
    out = jax.block_until_ready(
        kn_mlp_forward(c1["x"], c1["W1e"], c1["b1e"], c1["W2e"], c1["b2e"]))
    check(out, c1, residual=None)

    out_r = jax.block_until_ready(
        kn_mlp_forward(c1["x"], c1["W1e"], c1["b1e"], c1["W2e"], c1["b2e"],
                       residual=c1["res"]))
    check(out_r, c1, residual=c1["res"])

    # --- case 2: wider config exercising the hidden-dim reduction / accumulator path ---
    c2 = make_case(jax.random.split(jax.random.PRNGKey(1), 10),
                   r=2, m1=16, n1=16, m2=16, n2=32, Bsz=2, S=8)
    out2 = jax.block_until_ready(
        kn_mlp_forward(c2["x"], c2["W1e"], c2["b1e"], c2["W2e"], c2["b2e"],
                       residual=c2["res"], force_hidden_tiling=True, t_hid=256))
    check(out2, c2, residual=c2["res"])

    print("KERNEL_OK")
</pallas_src>

<mosaic_0001>
module attributes {stable_mosaic.version = 11 : i64} {
  func.func @kernel(%arg0: i32, %arg1: memref<8x16xf32, #tpu.memory_space<vmem>>, %arg2: memref<16x32xbf16, #tpu.memory_space<vmem>>, %arg3: memref<1x32xf32, #tpu.memory_space<vmem>>, %arg4: memref<32x16xbf16, #tpu.memory_space<vmem>>, %arg5: memref<1x16xf32, #tpu.memory_space<vmem>>, %arg6: memref<8x16xf32, #tpu.memory_space<vmem>>) attributes {dimension_semantics = [#tpu.dimension_semantics<parallel>], iteration_bounds = array<i64: 2>, scalar_prefetch = 0 : i64, scratch_operands = 0 : i64, tpu.core_type = #tpu.core_type<tc>, window_params = [{transform_indices = @transform_0, window_bounds = array<i64: 8, 16>}, {pipeline_mode = #tpu.pipeline_mode<synchronous>, transform_indices = @transform_1, window_bounds = array<i64: 16, 32>}, {pipeline_mode = #tpu.pipeline_mode<synchronous>, transform_indices = @transform_2, window_bounds = array<i64: 1, 32>}, {pipeline_mode = #tpu.pipeline_mode<synchronous>, transform_indices = @transform_3, window_bounds = array<i64: 32, 16>}, {pipeline_mode = #tpu.pipeline_mode<synchronous>, transform_indices = @transform_4, window_bounds = array<i64: 1, 16>}, {transform_indices = @transform_5, window_bounds = array<i64: 8, 16>}]} {
    %c0 = arith.constant 0 : index
    %c0_0 = arith.constant 0 : index
    %0 = vector.load %arg1[%c0, %c0_0] : memref<8x16xf32, #tpu.memory_space<vmem>>, vector<8x16xf32>
    %1 = arith.truncf %0 : vector<8x16xf32> to vector<8x16xbf16>
    %c0_1 = arith.constant 0 : index
    %c0_2 = arith.constant 0 : index
    %2 = vector.load %arg2[%c0_1, %c0_2] : memref<16x32xbf16, #tpu.memory_space<vmem>>, vector<16x32xbf16>
    %cst = arith.constant dense<0.000000e+00> : vector<8x32xf32>
    %3 = tpu.matmul %1, %2, %cst {dimension_numbers = #tpu.dot_dimension_numbers<[1], [0], [0], [1], [0, 0, 1, 1], [], []>} : vector<8x16xbf16>, vector<16x32xbf16>, vector<8x32xf32> -> vector<8x32xf32>
    %c0_3 = arith.constant 0 : index
    %c0_4 = arith.constant 0 : index
    %4 = vector.load %arg3[%c0_3, %c0_4] : memref<1x32xf32, #tpu.memory_space<vmem>>, vector<1x32xf32>
    %5 = vector.broadcast %4 : vector<1x32xf32> to vector<8x32xf32>
    %6 = arith.addf %3, %5 : vector<8x32xf32>
    %7 = arith.mulf %6, %6 : vector<8x32xf32>
    %8 = arith.mulf %6, %7 : vector<8x32xf32>
    %cst_5 = arith.constant 4.471500e-02 : f32
    %9 = vector.broadcast %cst_5 : f32 to vector<8x32xf32>
    %10 = arith.mulf %9, %8 : vector<8x32xf32>
    %11 = arith.addf %6, %10 : vector<8x32xf32>
    %cst_6 = arith.constant 0.797884583 : f32
    %12 = vector.broadcast %cst_6 : f32 to vector<8x32xf32>
    %13 = arith.mulf %12, %11 : vector<8x32xf32>
    %14 = math.tanh %13 : vector<8x32xf32>
    %cst_7 = arith.constant 1.000000e+00 : f32
    %15 = vector.broadcast %cst_7 : f32 to vector<8x32xf32>
    %16 = arith.addf %15, %14 : vector<8x32xf32>
    %cst_8 = arith.constant 5.000000e-01 : f32
    %17 = vector.broadcast %cst_8 : f32 to vector<8x32xf32>
    %18 = arith.mulf %17, %16 : vector<8x32xf32>
    %19 = arith.mulf %6, %18 : vector<8x32xf32>
    %20 = arith.truncf %19 : vector<8x32xf32> to vector<8x32xbf16>
    %c0_9 = arith.constant 0 : index
    %c0_10 = arith.constant 0 : index
    %21 = vector.load %arg4[%c0_9, %c0_10] : memref<32x16xbf16, #tpu.memory_space<vmem>>, vector<32x16xbf16>
    %cst_11 = arith.constant dense<0.000000e+00> : vector<8x16xf32>
    %22 = tpu.matmul %20, %21, %cst_11 {dimension_numbers = #tpu.dot_dimension_numbers<[1], [0], [0], [1], [0, 0, 1, 1], [], []>} : vector<8x32xbf16>, vector<32x16xbf16>, vector<8x16xf32> -> vector<8x16xf32>
    %c0_12 = arith.constant 0 : index
    %c0_13 = arith.constant 0 : index
    %23 = vector.load %arg5[%c0_12, %c0_13] : memref<1x16xf32, #tpu.memory_space<vmem>>, vector<1x16xf32>
    %24 = vector.broadcast %23 : vector<1x16xf32> to vector<8x16xf32>
    %25 = arith.addf %22, %24 : vector<8x16xf32>
    %c0_14 = arith.constant 0 : index
    %c0_15 = arith.constant 0 : index
    %26 = vector.load %arg6[%c0_14, %c0_15] : memref<8x16xf32, #tpu.memory_space<vmem>>, vector<8x16xf32>
    tpu.vector_store %arg6[%c0_14, %c0_15], %25 {strides = array<i32>} : memref<8x16xf32, #tpu.memory_space<vmem>>, vector<8x16xf32>,
    return
  }
  func.func @transform_0(%arg0: i32) -> (i32, i32) {
    %c0_i32 = arith.constant 0 : i32
    %c0_i32_0 = arith.constant 0 : i32
    return %arg0, %c0_i32 : i32, i32
  }
  func.func @transform_1(%arg0: i32) -> (i32, i32) {
    %c0_i32 = arith.constant 0 : i32
    %c0_i32_0 = arith.constant 0 : i32
    %c0_i32_1 = arith.constant 0 : i32
    return %c0_i32, %c0_i32_0 : i32, i32
  }
  func.func @transform_2(%arg0: i32) -> (i32, i32) {
    %c0_i32 = arith.constant 0 : i32
    %c0_i32_0 = arith.constant 0 : i32
    %c0_i32_1 = arith.constant 0 : i32
    return %c0_i32, %c0_i32_0 : i32, i32
  }
  func.func @transform_3(%arg0: i32) -> (i32, i32) {
    %c0_i32 = arith.constant 0 : i32
    %c0_i32_0 = arith.constant 0 : i32
    %c0_i32_1 = arith.constant 0 : i32
    return %c0_i32, %c0_i32_0 : i32, i32
  }
  func.func @transform_4(%arg0: i32) -> (i32, i32) {
    %c0_i32 = arith.constant 0 : i32
    %c0_i32_0 = arith.constant 0 : i32
    %c0_i32_1 = arith.constant 0 : i32
    return %c0_i32, %c0_i32_0 : i32, i32
  }
  func.func @transform_5(%arg0: i32) -> (i32, i32) {
    %c0_i32 = arith.constant 0 : i32
    %c0_i32_0 = arith.constant 0 : i32
    return %arg0, %c0_i32 : i32, i32
  }
}

module attributes {stable_mosaic.version = 11 : i64} {
  func.func @kernel(%arg0: i32, %arg1: memref<8x16xf32, #tpu.memory_space<vmem>>, %arg2: memref<16x32xbf16, #tpu.memory_space<vmem>>, %arg3: memref<1x32xf32, #tpu.memory_space<vmem>>, %arg4: memref<32x16xbf16, #tpu.memory_space<vmem>>, %arg5: memref<1x16xf32, #tpu.memory_space<vmem>>, %arg6: memref<8x16xf32, #tpu.memory_space<vmem>>) attributes {dimension_semantics = [#tpu.dimension_semantics<parallel>], iteration_bounds = array<i64: 2>, scalar_prefetch = 0 : i64, scratch_operands = 0 : i64, tpu.core_type = #tpu.core_type<tc>, window_params = [{transform_indices = @transform_0, window_bounds = array<i64: 8, 16>}, {pipeline_mode = #tpu.pipeline_mode<synchronous>, transform_indices = @transform_1, window_bounds = array<i64: 16, 32>}, {pipeline_mode = #tpu.pipeline_mode<synchronous>, transform_indices = @transform_2, window_bounds = array<i64: 1, 32>}, {pipeline_mode = #tpu.pipeline_mode<synchronous>, transform_indices = @transform_3, window_bounds = array<i64: 32, 16>}, {pipeline_mode = #tpu.pipeline_mode<synchronous>, transform_indices = @transform_4, window_bounds = array<i64: 1, 16>}, {transform_indices = @transform_5, window_bounds = array<i64: 8, 16>}]} {
    %c0 = arith.constant 0 : index
    %c0_0 = arith.constant 0 : index
    %0 = vector.load %arg1[%c0, %c0_0] : memref<8x16xf32, #tpu.memory_space<vmem>>, vector<8x16xf32>
    %1 = arith.truncf %0 : vector<8x16xf32> to vector<8x16xbf16>
    %c0_1 = arith.constant 0 : index
    %c0_2 = arith.constant 0 : index
    %2 = vector.load %arg2[%c0_1, %c0_2] : memref<16x32xbf16, #tpu.memory_space<vmem>>, vector<16x32xbf16>
    %cst = arith.constant dense<0.000000e+00> : vector<8x32xf32>
    %3 = tpu.matmul %1, %2, %cst {dimension_numbers = #tpu.dot_dimension_numbers<[1], [0], [0], [1], [0, 0, 1, 1], [], []>} : vector<8x16xbf16>, vector<16x32xbf16>, vector<8x32xf32> -> vector<8x32xf32>
    %c0_3 = arith.constant 0 : index
    %c0_4 = arith.constant 0 : index
    %4 = vector.load %arg3[%c0_3, %c0_4] : memref<1x32xf32, #tpu.memory_space<vmem>>, vector<1x32xf32>
    %5 = vector.broadcast %4 : vector<1x32xf32> to vector<8x32xf32>
    %6 = arith.addf %3, %5 : vector<8x32xf32>
    %7 = arith.mulf %6, %6 : vector<8x32xf32>
    %8 = arith.mulf %6, %7 : vector<8x32xf32>
    %cst_5 = arith.constant 4.471500e-02 : f32
    %9 = vector.broadcast %cst_5 : f32 to vector<8x32xf32>
    %10 = arith.mulf %9, %8 : vector<8x32xf32>
    %11 = arith.addf %6, %10 : vector<8x32xf32>
    %cst_6 = arith.constant 0.797884583 : f32
    %12 = vector.broadcast %cst_6 : f32 to vector<8x32xf32>
    %13 = arith.mulf %12, %11 : vector<8x32xf32>
    %14 = math.tanh %13 : vector<8x32xf32>
    %cst_7 = arith.constant 1.000000e+00 : f32
    %15 = vector.broadcast %cst_7 : f32 to vector<8x32xf32>
    %16 = arith.addf %15, %14 : vector<8x32xf32>
    %cst_8 = arith.constant 5.000000e-01 : f32
    %17 = vector.broadcast %cst_8 : f32 to vector<8x32xf32>
    %18 = arith.mulf %17, %16 : vector<8x32xf32>
    %19 = arith.mulf %6, %18 : vector<8x32xf32>
    %20 = arith.truncf %19 : vector<8x32xf32> to vector<8x32xbf16>
    %c0_9 = arith.constant 0 : index
    %c0_10 = arith.constant 0 : index
    %21 = vector.load %arg4[%c0_9, %c0_10] : memref<32x16xbf16, #tpu.memory_space<vmem>>, vector<32x16xbf16>
    %cst_11 = arith.constant dense<0.000000e+00> : vector<8x16xf32>
    %22 = tpu.matmul %20, %21, %cst_11 {dimension_numbers = #tpu.dot_dimension_numbers<[1], [0], [0], [1], [0, 0, 1, 1], [], []>} : vector<8x32xbf16>, vector<32x16xbf16>, vector<8x16xf32> -> vector<8x16xf32>
    %c0_12 = arith.constant 0 : index
    %c0_13 = arith.constant 0 : index
    %23 = vector.load %arg5[%c0_12, %c0_13] : memref<1x16xf32, #tpu.memory_space<vmem>>, vector<1x16xf32>
    %24 = vector.broadcast %23 : vector<1x16xf32> to vector<8x16xf32>
    %25 = arith.addf %22, %24 : vector<8x16xf32>
    %c0_14 = arith.constant 0 : index
    %c0_15 = arith.constant 0 : index
    %26 = vector.load %arg6[%c0_14, %c0_15] : memref<8x16xf32, #tpu.memory_space<vmem>>, vector<8x16xf32>
    tpu.vector_store %arg6[%c0_14, %c0_15], %25 {strides = array<i32>} : memref<8x16xf32, #tpu.memory_space<vmem>>, vector<8x16xf32>,
    return
  }
  func.func @transform_0(%arg0: i32) -> (i32, i32) {
    %c0_i32 = arith.constant 0 : i32
    %c0_i32_0 = arith.constant 0 : i32
    return %arg0, %c0_i32 : i32, i32
  }
  func.func @transform_1(%arg0: i32) -> (i32, i32) {
    %c0_i32 = arith.constant 0 : i32
    %c0_i32_0 = arith.constant 0 : i32
    %c0_i32_1 = arith.constant 0 : i32
    return %c0_i32, %c0_i32_0 : i32, i32
  }
  func.func @transform_2(%arg0: i32) -> (i32, i32) {
    %c0_i32 = arith.constant 0 : i32
    %c0_i32_0 = arith.constant 0 : i32
    %c0_i32_1 = arith.constant 0 : i32
    return %c0_i32, %c0_i32_0 : i32, i32
  }
  func.func @transform_3(%arg0: i32) -> (i32, i32) {
    %c0_i32 = arith.constant 0 : i32
    %c0_i32_0 = arith.constant 0 : i32
    %c0_i32_1 = arith.constant 0 : i32
    return %c0_i32, %c0_i32_0 : i32, i32
  }
  func.func @transform_4(%arg0: i32) -> (i32, i32) {
    %c0_i32 = arith.constant 0 : i32
    %c0_i32_0 = arith.constant 0 : i32
    %c0_i32_1 = arith.constant 0 : i32
    return %c0_i32, %c0_i32_0 : i32, i32
  }
  func.func @transform_5(%arg0: i32) -> (i32, i32) {
    %c0_i32 = arith.constant 0 : i32
    %c0_i32_0 = arith.constant 0 : i32
    return %arg0, %c0_i32 : i32, i32
  }
}

</mosaic_0001>

<llo_original>
// kernel: tpu_custom_call.1
$region0: #{tpu_custom_call.1}
  #allocation0 [shape = 'u32[]', space=smem, size = 0x4, offset = 0x4, fixed_abs, tag = 'smem constant byte address 0x4 - core index']
  #allocation1 [shape = 'u32[144,128]{1,0:T(1,128)}', space=vmem, size = 0x12000, scoped, tag = 'internal scratch']
  %s0 = inlined_call_operand.vmem [shape: f32[16,16], index: 0, kind: input, shape index: {}]
  %s1 = inlined_call_operand.vmem [shape: bf16[16,32], index: 1, kind: input, shape index: {}]
  %s2 = inlined_call_operand.vmem [shape: f32[1,32], index: 2, kind: input, shape index: {}]
  %s3 = inlined_call_operand.vmem [shape: bf16[32,16], index: 3, kind: input, shape index: {}]
  %s4 = inlined_call_operand.vmem [shape: f32[1,16], index: 4, kind: input, shape index: {}]
  %s5 = inlined_call_operand.hbm [shape: f32[16,16], index: 5, kind: output, shape index: {}]
  %s6 = sld [smem:[#allocation0]]
  $region53: #{tpu_custom_call.1} parent=0
    _
  %s8 = ssub.s32 1, %s6
  %s9 = scalar_select 0, %s8, %s6
  $region1: #{tpu_custom_call.1} parent=0
    #allocation2 [shape = 'u8[8192]{0}', space=vmem, size = 0x2000, scoped, tag = 'output window, operand 0']
    #allocation3 [shape = 's32[2]{0}', space=sflag, size = 0x8, scoped, tag = 'scoped memory for tpu_custom_call.1']
    %10 = vsyncpa [#allocation3], 0
    %s11 = scalar_lea.sflag [#allocation3], 1
    %12 = vsyncpa %s11, 0
    loop: start=0, step=1, limit=4
    $region2: #{tpu_custom_call.1} parent=1 // loop_pre_header
      _
    $region3: #{tpu_custom_call.1} parent=1 // loop_header
      %s14 = sphi 0, %s18
      %p15 = scmp.ge.s32.totalorder %s14, 4
      %s24 = sphi 0, %s26
      %s27 = sphi 0, %s24
      %s28 = sphi 0, %s27
      %s44 = sphi 0, %s28
      %s48 = sphi 0, %s48
      %s50 = sphi 0, %s48
      %s51 = sphi 0, %s50
      %s65 = sphi 0, %s51
      %s69 = sphi 0, %s69
      %s71 = sphi 0, %s69
      %s72 = sphi 0, %s71
      %s86 = sphi 0, %s72
      %s90 = sphi 0, %s90
      %s92 = sphi 0, %s90
      %s93 = sphi 0, %s92
      %s107 = sphi 0, %s93
      %s111 = sphi 0, %s111
      %s113 = sphi 0, %s111
      %s114 = sphi 0, %s113
      %s128 = sphi 0, %s114
      %s134 = sphi 0, %s136
      %s137 = sphi 0, %s134
      %s138 = sphi 0, %s137
      %s154 = sphi 0, %s138
    $region4: #{tpu_custom_call.1} parent=1 // loop_header_branch
      %17 = sbr.rel (%p15) target = $region8
    $region5: #{tpu_custom_call.1} parent=1 // loop_body
      %s19 = ssub.s32 %s14, 1
      %s20 = ssub.s32 %s14, 2
      %s21 = sadd.s32 %s14, 1
      %s22 = ssub.s32 %s14, %s21
      %p23 = scmp.eq.s32.totalorder %s22, 0
      %s25 = sadd.s32 %s24, 1
      %s26 = scalar_select %p23, %s24, %s25
      %p29 = pneg %p23
      %p30 = scmp.eq.s32.totalorder %s14, 1
      %p31 = por %p29, %p30
      %p32 = scmp.ne.s32.totalorder %s24, %s27
      %p33 = scmp.eq.s32.totalorder %s14, 0
      %p34 = por %p32, %p33
      %p35 = scmp.ne.s32.totalorder %s24, %s27
      %p36 = scmp.eq.s32.totalorder %s19, 1
      %p37 = por %p35, %p36
      %p38 = scmp.ne.s32.totalorder %s27, %s28
      %p39 = scmp.eq.s32.totalorder %s19, 0
      %p40 = por %p38, %p39
      %p41 = scmp.ne.s32.totalorder %s27, %s28
      %p42 = scmp.eq.s32.totalorder %s20, 1
      %p43 = por %p41, %p42
      %p45 = scmp.ne.s32.totalorder %s28, %s44
      %p46 = scmp.eq.s32.totalorder %s20, 0
      %p47 = por %p45, %p46
      %s49 = sadd.s32 %s48, 1
      %p52 = scmp.eq.s32.totalorder %s14, 1
      %p53 = scmp.ne.s32.totalorder %s48, %s50
      %p54 = scmp.eq.s32.totalorder %s14, 0
      %p55 = por %p53, %p54
      %p56 = scmp.ne.s32.totalorder %s48, %s50
      %p57 = scmp.eq.s32.totalorder %s19, 1
      %p58 = por %p56, %p57
      %p59 = scmp.ne.s32.totalorder %s50, %s51
      %p60 = scmp.eq.s32.totalorder %s19, 0
      %p61 = por %p59, %p60
      %p62 = scmp.ne.s32.totalorder %s50, %s51
      %p63 = scmp.eq.s32.totalorder %s20, 1
      %p64 = por %p62, %p63
      %p66 = scmp.ne.s32.totalorder %s51, %s65
      %p67 = scmp.eq.s32.totalorder %s20, 0
      %p68 = por %p66, %p67
      %s70 = sadd.s32 %s69, 1
      %p73 = scmp.eq.s32.totalorder %s14, 1
      %p74 = scmp.ne.s32.totalorder %s69, %s71
      %p75 = scmp.eq.s32.totalorder %s14, 0
      %p76 = por %p74, %p75
      %p77 = scmp.ne.s32.totalorder %s69, %s71
      %p78 = scmp.eq.s32.totalorder %s19, 1
      %p79 = por %p77, %p78
      %p80 = scmp.ne.s32.totalorder %s71, %s72
      %p81 = scmp.eq.s32.totalorder %s19, 0
      %p82 = por %p80, %p81
      %p83 = scmp.ne.s32.totalorder %s71, %s72
      %p84 = scmp.eq.s32.totalorder %s20, 1
      %p85 = por %p83, %p84
      %p87 = scmp.ne.s32.totalorder %s72, %s86
      %p88 = scmp.eq.s32.totalorder %s20, 0
      %p89 = por %p87, %p88
      %s91 = sadd.s32 %s90, 1
      %p94 = scmp.eq.s32.totalorder %s14, 1
      %p95 = scmp.ne.s32.totalorder %s90, %s92
      %p96 = scmp.eq.s32.totalorder %s14, 0
      %p97 = por %p95, %p96
      %p98 = scmp.ne.s32.totalorder %s90, %s92
      %p99 = scmp.eq.s32.totalorder %s19, 1
      %p100 = por %p98, %p99
      %p101 = scmp.ne.s32.totalorder %s92, %s93
      %p102 = scmp.eq.s32.totalorder %s19, 0
      %p103 = por %p101, %p102
      %p104 = scmp.ne.s32.totalorder %s92, %s93
      %p105 = scmp.eq.s32.totalorder %s20, 1
      %p106 = por %p104, %p105
      %p108 = scmp.ne.s32.totalorder %s93, %s107
      %p109 = scmp.eq.s32.totalorder %s20, 0
      %p110 = por %p108, %p109
      %s112 = sadd.s32 %s111, 1
      %p115 = scmp.eq.s32.totalorder %s14, 1
      %p116 = scmp.ne.s32.totalorder %s111, %s113
      %p117 = scmp.eq.s32.totalorder %s14, 0
      %p118 = por %p116, %p117
      %p119 = scmp.ne.s32.totalorder %s111, %s113
      %p120 = scmp.eq.s32.totalorder %s19, 1
      %p121 = por %p119, %p120
      %p122 = scmp.ne.s32.totalorder %s113, %s114
      %p123 = scmp.eq.s32.totalorder %s19, 0
      %p124 = por %p122, %p123
      %p125 = scmp.ne.s32.totalorder %s113, %s114
      %p126 = scmp.eq.s32.totalorder %s20, 1
      %p127 = por %p125, %p126
      %p129 = scmp.ne.s32.totalorder %s114, %s128
      %p130 = scmp.eq.s32.totalorder %s20, 0
      %p131 = por %p129, %p130
      %s132 = ssub.s32 %s14, %s21
      %p133 = scmp.eq.s32.totalorder %s132, 0
      %s135 = sadd.s32 %s134, 1
      %s136 = scalar_select %p133, %s134, %s135
      %p139 = pneg %p133
      %p140 = scmp.eq.s32.totalorder %s14, 1
      %p141 = por %p139, %p140
      %p142 = scmp.ne.s32.totalorder %s134, %s137
      %p143 = scmp.eq.s32.totalorder %s14, 0
      %p144 = por %p142, %p143
      %p145 = scmp.ne.s32.totalorder %s134, %s137
      %p146 = scmp.eq.s32.totalorder %s19, 1
      %p147 = por %p145, %p146
      %p148 = scmp.ne.s32.totalorder %s137, %s138
      %p149 = scmp.eq.s32.totalorder %s19, 0
      %p150 = por %p148, %p149
      %p151 = scmp.ne.s32.totalorder %s137, %s138
      %p152 = scmp.eq.s32.totalorder %s20, 1
      %p153 = por %p151, %p152
      %p155 = scmp.ne.s32.totalorder %s138, %s154
      %p156 = scmp.eq.s32.totalorder %s20, 0
      %p157 = por %p155, %p156
      %p158 = scmp.le.s32.totalorder 1, %s14
      %p159 = scmp.lt.s32.totalorder %s14, 3
      %p160 = pnand %p158, %p159
      %p161 = pneg %p160
      // Predicated region
      $region9: #{tpu_custom_call.1} parent=5 // pred_check
        _
      $region10: #{tpu_custom_call.1} parent=5 // pred_check_branch
        %163 = sbr.rel (%p160) target = $region12
      $region11: #{tpu_custom_call.1} parent=5 // pred_region
        %s164 = ssub.s32 %s14, 1
        // Predicated region
        $region13: #{tpu_custom_call.1} parent=11 // pred_check
          %p165 = pneg %p61
        $region14: #{tpu_custom_call.1} parent=11 // pred_check_branch
          %167 = sbr.rel (%p165) target = $region16
        $region15: #{tpu_custom_call.1} parent=11 // pred_region
          _
        $region16: #{tpu_custom_call.1} parent=11 // pred_fallthru
          _
        // Predicated region
        $region17: #{tpu_custom_call.1} parent=11 // pred_check
          %p168 = pneg %p82
        $region18: #{tpu_custom_call.1} parent=11 // pred_check_branch
          %170 = sbr.rel (%p168) target = $region20
        $region19: #{tpu_custom_call.1} parent=11 // pred_region
          _
        $region20: #{tpu_custom_call.1} parent=11 // pred_fallthru
          _
        // Predicated region
        $region21: #{tpu_custom_call.1} parent=11 // pred_check
          %p171 = pneg %p103
        $region22: #{tpu_custom_call.1} parent=11 // pred_check_branch
          %173 = sbr.rel (%p171) target = $region24
        $region23: #{tpu_custom_call.1} parent=11 // pred_region
          _
        $region24: #{tpu_custom_call.1} parent=11 // pred_fallthru
          _
        // Predicated region
        $region25: #{tpu_custom_call.1} parent=11 // pred_check
          %p174 = pneg %p124
        $region26: #{tpu_custom_call.1} parent=11 // pred_check_branch
          %176 = sbr.rel (%p174) target = $region28
        $region27: #{tpu_custom_call.1} parent=11 // pred_region
          _
        $region28: #{tpu_custom_call.1} parent=11 // pred_fallthru
          _
      $region12: #{tpu_custom_call.1} parent=5 // pred_fallthru
        _
      %p177 = scmp.lt.s32.totalorder %s14, 2
      // Predicated region
      $region29: #{tpu_custom_call.1} parent=5 // pred_check
        %p178 = pneg %p177
      $region30: #{tpu_custom_call.1} parent=5 // pred_check_branch
        %180 = sbr.rel (%p178) target = $region32
      $region31: #{tpu_custom_call.1} parent=5 // pred_region
        // Predicated region
        $region33: #{tpu_custom_call.1} parent=31 // pred_check
          %p181 = pneg %p34
        $region34: #{tpu_custom_call.1} parent=31 // pred_check_branch
          %183 = sbr.rel (%p181) target = $region36
        $region35: #{tpu_custom_call.1} parent=31 // pred_region
          %p184 = scmp.lt.s32.totalorder %s14, 1
          %s185 = scalar_select %p184, %s14, 1
          %s186 = smul.addr %s185, 8
          %s187 = scalar_lea.vmem %s0, %s186
        $region36: #{tpu_custom_call.1} parent=31 // pred_fallthru
          _
      $region32: #{tpu_custom_call.1} parent=5 // pred_fallthru
        _
      %p188 = scmp.le.s32.totalorder 1, %s14
      %p189 = scmp.lt.s32.totalorder %s14, 3
      %p190 = pnand %p188, %p189
      %p191 = pneg %p190
      // Predicated region
      $region37: #{tpu_custom_call.1} parent=5 // pred_check
        _
      $region38: #{tpu_custom_call.1} parent=5 // pred_check_branch
        %193 = sbr.rel (%p190) target = $region40
      $region39: #{tpu_custom_call.1} parent=5 // pred_region
        %s194 = ssub.s32 %s14, 1
        %p195 = scmp.lt.s32.totalorder %s19, 1
        %s196 = scalar_select %p195, %s19, 1
        %s197 = smul.addr %s196, 8
        %s198 = scalar_lea.vmem %s0, %s197
        %p199 = pneg %p40
        %p200 = pneg %p37
        %p201 = pneg %p61
        %p202 = pneg %p58
        %p203 = pneg %p82
        %p204 = pneg %p79
        %p205 = pneg %p103
        %p206 = pneg %p100
        %p207 = pneg %p124
        %p208 = pneg %p121
        %p209 = pneg %p150
        %p210 = pneg %p147
        %s211 = sand.u32 %s137, 1
        %s212 = scalar_lea.sflag [#allocation3], %s211
        %s213 = sand.u32 %s137, 1
        %s214 = smul.addr %s213, 8
        %s215 = scalar_lea.vmem [#allocation2], %s214
        %p216 = scmp.lt.s32.totalorder %s19, 1
        %s217 = scalar_select %p216, %s19, 1
        %s218 = smul.addr %s217, 8
        %s219 = scalar_lea.vmem %s0, %s218
        %v221 = vld [vmem:[%s219] sm:$0xff]
        %v222 = vpack.c.bf16 %v221, %v221
        %v223 = vld [vmem:[%s1] sm:$0xf]
        %v224 = vld [vmem:[%s1 + $0x4] sm:$0xf]
        %v225 = vld [vmem:[%s2] sm:$0x1]
        %v227 = vlaneseq
        %v228 = vshrl.u32 %v227, 7
        %v229 = vsub.s32 0, %v228
        %v230 = vrot.slane %v225, %v229
        %v234 = vunpack.c.l.b16 %v223
        %v235 = vunpack.c.l.b16 %v224
        %v236 = vpack.c.b16 %v235, %v234
        %vm238 = vcmask 130048
        %v240 = vsel %vm238, %v222, 0
        %242 = vmatprep.subr.bf16.mxu0 0
        %243 = vmatpush1.bf16.msra.mxu0 %v236
        %244 = vmatprep.subr.bf16.mxu0 0
        %245 = vmatpush1.bf16.msra.mxu0 0
        %246 = vmatprep.subr.bf16.mxu0 0
        %247 = vmatpush1.bf16.msra.mxu0 0
        %248 = vmatprep.subr.bf16.mxu0 0
        %249 = vmatpush1.bf16.msra.mxu0 0
        %250 = vmatprep.subr.bf16.mxu0 0
        %251 = vmatpush1.bf16.msra.mxu0 0
        %252 = vmatprep.subr.bf16.mxu0 0
        %253 = vmatpush1.bf16.msra.mxu0 0
        %254 = vmatprep.subr.bf16.mxu0 0
        %255 = vmatpush1.bf16.msra.mxu0 0
        %256 = vmatprep.subr.bf16.mxu0 0
        %257 = vmatpush1.bf16.msra.mxu0 0
        %258 = vmatprep.subr.bf16.mxu0 0
        %259 = vmatpush1.bf16.msra.mxu0 0
        %260 = vmatprep.subr.bf16.mxu0 0
        %261 = vmatpush1.bf16.msra.mxu0 0
        %262 = vmatprep.subr.bf16.mxu0 0
        %263 = vmatpush1.bf16.msra.mxu0 0
        %264 = vmatprep.subr.bf16.mxu0 0
        %265 = vmatpush1.bf16.msra.mxu0 0
        %266 = vmatprep.subr.bf16.mxu0 0
        %267 = vmatpush1.bf16.msra.mxu0 0
        %268 = vmatprep.subr.bf16.mxu0 0
        %269 = vmatpush1.bf16.msra.mxu0 0
        %270 = vmatprep.subr.bf16.mxu0 0
        %271 = vmatpush1.bf16.msra.mxu0 0
        %272 = vmatprep.subr.bf16.mxu0 0
        %273 = vmatpush1.bf16.msra.mxu0 0
        %274 = vmatprep.mubr.bf16.mxu0 0
        %275 = vmatmul.mubr.bf16.gmra.mrb[0].mxu0 %v240
        %v276 = vpop.f32.mrb[0].mxu0
        %v277 = vadd.f32 %v230, %v276
        %v278 = vpop.f32.mrb[0].mxu0
        %v279 = vpop.f32.mrb[0].mxu0
        %v280 = vpop.f32.mrb[0].mxu0
        %281 = vdwg.mxu0
        %v282 = vmul.f32 %v277, %v277
        %v283 = vmul.f32 %v277, %v282
        %v284 = vmul.f32 %v283, 0.044715
        %v285 = vadd.f32 %v277, %v284
        %v286 = vmul.f32 %v285, 0.7978846
        %v287 = vtanh.pop %v286
        %v288 = vadd.f32 %v287, 1.0
        %v289 = vmul.f32 %v288, 0.5
        %v290 = vmul.f32 %v277, %v289
        %v291 = vpack.c.bf16 %v290, %v290
        %v292 = vld [vmem:[%s3] sm:$0xf]
        %v293 = vld [vmem:[%s3 + $0x4] sm:$0xf]
        %v294 = vld [vmem:[%s3 + $0x8] sm:$0xf]
        %v295 = vld [vmem:[%s3 + $0xc] sm:$0xf]
        %v296 = vld [vmem:[%s4] sm:$0x1]
        %v298 = vlaneseq
        %v299 = vshrl.u32 %v298, 7
        %v300 = vsub.s32 0, %v299
        %v301 = vrot.slane %v296, %v300
        %v307 = vunpack.c.l.b16 %v292
        %v308 = vunpack.c.l.b16 %v293
        %v309 = vunpack.c.l.b16 %v294
        %v310 = vunpack.c.l.b16 %v295
        %v311 = vpack.c.b16 %v308, %v307
        %v312 = vpack.c.b16 %v310, %v309
        %vm315 = vcmask 261120
        %v317 = vsel %vm315, %v291, 0
        %319 = vmatprep.subr.bf16.mxu0 0
        %320 = vmatpush1.bf16.msra.mxu0 %v311
        %321 = vmatprep.subr.bf16.mxu0 0
        %322 = vmatpush1.bf16.msra.mxu0 %v312
        %323 = vmatprep.subr.bf16.mxu0 0
        %324 = vmatpush1.bf16.msra.mxu0 0
        %325 = vmatprep.subr.bf16.mxu0 0
        %326 = vmatpush1.bf16.msra.mxu0 0
        %327 = vmatprep.subr.bf16.mxu0 0
        %328 = vmatpush1.bf16.msra.mxu0 0
        %329 = vmatprep.subr.bf16.mxu0 0
        %330 = vmatpush1.bf16.msra.mxu0 0
        %331 = vmatprep.subr.bf16.mxu0 0
        %332 = vmatpush1.bf16.msra.mxu0 0
        %333 = vmatprep.subr.bf16.mxu0 0
        %334 = vmatpush1.bf16.msra.mxu0 0
        %335 = vmatprep.subr.bf16.mxu0 0
        %336 = vmatpush1.bf16.msra.mxu0 0
        %337 = vmatprep.subr.bf16.mxu0 0
        %338 = vmatpush1.bf16.msra.mxu0 0
        %339 = vmatprep.subr.bf16.mxu0 0
        %340 = vmatpush1.bf16.msra.mxu0 0
        %341 = vmatprep.subr.bf16.mxu0 0
        %342 = vmatpush1.bf16.msra.mxu0 0
        %343 = vmatprep.subr.bf16.mxu0 0
        %344 = vmatpush1.bf16.msra.mxu0 0
        %345 = vmatprep.subr.bf16.mxu0 0
        %346 = vmatpush1.bf16.msra.mxu0 0
        %347 = vmatprep.subr.bf16.mxu0 0
        %348 = vmatpush1.bf16.msra.mxu0 0
        %349 = vmatprep.subr.bf16.mxu0 0
        %350 = vmatpush1.bf16.msra.mxu0 0
        %351 = vmatprep.mubr.bf16.mxu0 0
        %352 = vmatmul.mubr.bf16.gmra.mrb[0].mxu0 %v317
        %v353 = vpop.f32.mrb[0].mxu0
        %v354 = vadd.f32 %v301, %v353
        %v355 = vpop.f32.mrb[0].mxu0
        %v356 = vpop.f32.mrb[0].mxu0
        %v357 = vpop.f32.mrb[0].mxu0
        %358 = vdwg.mxu0
        %359 = vst.msk [vmem:[%s215] sm:$0xff] %vm238, %v354
        %s360 = sand.u32 %s137, 1
        %s361 = scalar_lea.sflag [#allocation3], %s360
        %s362 = sand.u32 %s137, 1
        %s363 = smul.addr %s362, 8
        %s364 = scalar_lea.vmem [#allocation2], %s363
        // Predicated region
        $region41: #{tpu_custom_call.1} parent=39 // pred_check
          %p365 = pneg %p147
        $region42: #{tpu_custom_call.1} parent=39 // pred_check_branch
          %367 = sbr.rel (%p365) target = $region44
        $region43: #{tpu_custom_call.1} parent=39 // pred_region
          %s369 = ssub.s32 128, 128
          %370 = vsyncadd %s361, %s369
          %s371 = smul.addr %s19, 128
          %s372 = scalar_lea.hbm %s5, %s371
          %s374 = sshll.u32 %s364, 4
          %s375 = int_to_ptr.vmem [resolvable:$true] %s374
          %377 = dma.vmem_to_hbm [thread:$0]  %s375, 128, %s372, %s361
        $region44: #{tpu_custom_call.1} parent=39 // pred_fallthru
          _
      $region40: #{tpu_custom_call.1} parent=5 // pred_fallthru
        _
      %p378 = scmp.le.s32.totalorder 2, %s14
      // Predicated region
      $region45: #{tpu_custom_call.1} parent=5 // pred_check
        %p379 = pneg %p378
      $region46: #{tpu_custom_call.1} parent=5 // pred_check_branch
        %381 = sbr.rel (%p379) target = $region48
      $region47: #{tpu_custom_call.1} parent=5 // pred_region
        %s382 = ssub.s32 %s14, 2
        // Predicated region
        $region49: #{tpu_custom_call.1} parent=47 // pred_check
          %p383 = pneg %p153
        $region50: #{tpu_custom_call.1} parent=47 // pred_check_branch
          %385 = sbr.rel (%p383) target = $region52
        $region51: #{tpu_custom_call.1} parent=47 // pred_region
          %s386 = sand.u32 %s138, 1
          %s387 = scalar_lea.sflag [#allocation3], %s386
          %s388 = sand.u32 %s138, 1
          %s389 = smul.addr %s388, 8
          %s390 = scalar_lea.vmem [#allocation2], %s389
          %391 = dma.done %s387, 128
        $region52: #{tpu_custom_call.1} parent=47 // pred_fallthru
          _
      $region48: #{tpu_custom_call.1} parent=5 // pred_fallthru
        _
    $region6: #{tpu_custom_call.1} parent=1 // loop_footer
      %s18 = sadd.s32 1, %s14
    $region7: #{tpu_custom_call.1} parent=1 // loop_footer_branch
      %13 = sbr.rel target = $region3
    $region8: #{tpu_custom_call.1} parent=1 // loop_exit
      _
    %392 = vsyncpa [#allocation3], 1
    %s393 = scalar_lea.sflag [#allocation3], 1
    %394 = vsyncpa %s393, 1

// kernel: tpu_custom_call.1
$region0: #{tpu_custom_call.1}
  #allocation0 [shape = 'u32[]', space=smem, size = 0x4, offset = 0x4, fixed_abs, tag = 'smem constant byte address 0x4 - core index']
  #allocation1 [shape = 'u32[144,128]{1,0:T(1,128)}', space=vmem, size = 0x12000, scoped, tag = 'internal scratch']
  %s0 = inlined_call_operand.vmem [shape: f32[16,16], index: 0, kind: input, shape index: {}]
  %s1 = inlined_call_operand.vmem [shape: bf16[16,32], index: 1, kind: input, shape index: {}]
  %s2 = inlined_call_operand.vmem [shape: f32[1,32], index: 2, kind: input, shape index: {}]
  %s3 = inlined_call_operand.vmem [shape: bf16[32,16], index: 3, kind: input, shape index: {}]
  %s4 = inlined_call_operand.vmem [shape: f32[1,16], index: 4, kind: input, shape index: {}]
  %s5 = inlined_call_operand.hbm [shape: f32[16,16], index: 5, kind: output, shape index: {}]
  %s6 = sld [smem:[#allocation0]]
  $region53: #{tpu_custom_call.1} parent=0
    _
  %s8 = ssub.s32 1, %s6
  %s9 = scalar_select 0, %s8, %s6
  $region1: #{tpu_custom_call.1} parent=0
    #allocation2 [shape = 'u8[8192]{0}', space=vmem, size = 0x2000, scoped, tag = 'output window, operand 0']
    #allocation3 [shape = 's32[2]{0}', space=sflag, size = 0x8, scoped, tag = 'scoped memory for tpu_custom_call.1']
    %10 = vsyncpa [#allocation3], 0
    %s11 = scalar_lea.sflag [#allocation3], 1
    %12 = vsyncpa %s11, 0
    loop: start=0, step=1, limit=4
    $region2: #{tpu_custom_call.1} parent=1 // loop_pre_header
      _
    $region3: #{tpu_custom_call.1} parent=1 // loop_header
      %s14 = sphi 0, %s18
      %p15 = scmp.ge.s32.totalorder %s14, 4
      %s24 = sphi 0, %s26
      %s27 = sphi 0, %s24
      %s28 = sphi 0, %s27
      %s44 = sphi 0, %s28
      %s48 = sphi 0, %s48
      %s50 = sphi 0, %s48
      %s51 = sphi 0, %s50
      %s65 = sphi 0, %s51
      %s69 = sphi 0, %s69
      %s71 = sphi 0, %s69
      %s72 = sphi 0, %s71
      %s86 = sphi 0, %s72
      %s90 = sphi 0, %s90
      %s92 = sphi 0, %s90
      %s93 = sphi 0, %s92
      %s107 = sphi 0, %s93
      %s111 = sphi 0, %s111
      %s113 = sphi 0, %s111
      %s114 = sphi 0, %s113
      %s128 = sphi 0, %s114
      %s134 = sphi 0, %s136
      %s137 = sphi 0, %s134
      %s138 = sphi 0, %s137
      %s154 = sphi 0, %s138
    $region4: #{tpu_custom_call.1} parent=1 // loop_header_branch
      %17 = sbr.rel (%p15) target = $region8
    $region5: #{tpu_custom_call.1} parent=1 // loop_body
      %s19 = ssub.s32 %s14, 1
      %s20 = ssub.s32 %s14, 2
      %s21 = sadd.s32 %s14, 1
      %s22 = ssub.s32 %s14, %s21
      %p23 = scmp.eq.s32.totalorder %s22, 0
      %s25 = sadd.s32 %s24, 1
      %s26 = scalar_select %p23, %s24, %s25
      %p29 = pneg %p23
      %p30 = scmp.eq.s32.totalorder %s14, 1
      %p31 = por %p29, %p30
      %p32 = scmp.ne.s32.totalorder %s24, %s27
      %p33 = scmp.eq.s32.totalorder %s14, 0
      %p34 = por %p32, %p33
      %p35 = scmp.ne.s32.totalorder %s24, %s27
      %p36 = scmp.eq.s32.totalorder %s19, 1
      %p37 = por %p35, %p36
      %p38 = scmp.ne.s32.totalorder %s27, %s28
      %p39 = scmp.eq.s32.totalorder %s19, 0
      %p40 = por %p38, %p39
      %p41 = scmp.ne.s32.totalorder %s27, %s28
      %p42 = scmp.eq.s32.totalorder %s20, 1
      %p43 = por %p41, %p42
      %p45 = scmp.ne.s32.totalorder %s28, %s44
      %p46 = scmp.eq.s32.totalorder %s20, 0
      %p47 = por %p45, %p46
      %s49 = sadd.s32 %s48, 1
      %p52 = scmp.eq.s32.totalorder %s14, 1
      %p53 = scmp.ne.s32.totalorder %s48, %s50
      %p54 = scmp.eq.s32.totalorder %s14, 0
      %p55 = por %p53, %p54
      %p56 = scmp.ne.s32.totalorder %s48, %s50
      %p57 = scmp.eq.s32.totalorder %s19, 1
      %p58 = por %p56, %p57
      %p59 = scmp.ne.s32.totalorder %s50, %s51
      %p60 = scmp.eq.s32.totalorder %s19, 0
      %p61 = por %p59, %p60
      %p62 = scmp.ne.s32.totalorder %s50, %s51
      %p63 = scmp.eq.s32.totalorder %s20, 1
      %p64 = por %p62, %p63
      %p66 = scmp.ne.s32.totalorder %s51, %s65
      %p67 = scmp.eq.s32.totalorder %s20, 0
      %p68 = por %p66, %p67
      %s70 = sadd.s32 %s69, 1
      %p73 = scmp.eq.s32.totalorder %s14, 1
      %p74 = scmp.ne.s32.totalorder %s69, %s71
      %p75 = scmp.eq.s32.totalorder %s14, 0
      %p76 = por %p74, %p75
      %p77 = scmp.ne.s32.totalorder %s69, %s71
      %p78 = scmp.eq.s32.totalorder %s19, 1
      %p79 = por %p77, %p78
      %p80 = scmp.ne.s32.totalorder %s71, %s72
      %p81 = scmp.eq.s32.totalorder %s19, 0
      %p82 = por %p80, %p81
      %p83 = scmp.ne.s32.totalorder %s71, %s72
      %p84 = scmp.eq.s32.totalorder %s20, 1
      %p85 = por %p83, %p84
      %p87 = scmp.ne.s32.totalorder %s72, %s86
      %p88 = scmp.eq.s32.totalorder %s20, 0
      %p89 = por %p87, %p88
      %s91 = sadd.s32 %s90, 1
      %p94 = scmp.eq.s32.totalorder %s14, 1
      %p95 = scmp.ne.s32.totalorder %s90, %s92
      %p96 = scmp.eq.s32.totalorder %s14, 0
      %p97 = por %p95, %p96
      %p98 = scmp.ne.s32.totalorder %s90, %s92
      %p99 = scmp.eq.s32.totalorder %s19, 1
      %p100 = por %p98, %p99
      %p101 = scmp.ne.s32.totalorder %s92, %s93
      %p102 = scmp.eq.s32.totalorder %s19, 0
      %p103 = por %p101, %p102
      %p104 = scmp.ne.s32.totalorder %s92, %s93
      %p105 = scmp.eq.s32.totalorder %s20, 1
      %p106 = por %p104, %p105
      %p108 = scmp.ne.s32.totalorder %s93, %s107
      %p109 = scmp.eq.s32.totalorder %s20, 0
      %p110 = por %p108, %p109
      %s112 = sadd.s32 %s111, 1
      %p115 = scmp.eq.s32.totalorder %s14, 1
      %p116 = scmp.ne.s32.totalorder %s111, %s113
      %p117 = scmp.eq.s32.totalorder %s14, 0
      %p118 = por %p116, %p117
      %p119 = scmp.ne.s32.totalorder %s111, %s113
      %p120 = scmp.eq.s32.totalorder %s19, 1
      %p121 = por %p119, %p120
      %p122 = scmp.ne.s32.totalorder %s113, %s114
      %p123 = scmp.eq.s32.totalorder %s19, 0
      %p124 = por %p122, %p123
      %p125 = scmp.ne.s32.totalorder %s113, %s114
      %p126 = scmp.eq.s32.totalorder %s20, 1
      %p127 = por %p125, %p126
      %p129 = scmp.ne.s32.totalorder %s114, %s128
      %p130 = scmp.eq.s32.totalorder %s20, 0
      %p131 = por %p129, %p130
      %s132 = ssub.s32 %s14, %s21
      %p133 = scmp.eq.s32.totalorder %s132, 0
      %s135 = sadd.s32 %s134, 1
      %s136 = scalar_select %p133, %s134, %s135
      %p139 = pneg %p133
      %p140 = scmp.eq.s32.totalorder %s14, 1
      %p141 = por %p139, %p140
      %p142 = scmp.ne.s32.totalorder %s134, %s137
      %p143 = scmp.eq.s32.totalorder %s14, 0
      %p144 = por %p142, %p143
      %p145 = scmp.ne.s32.totalorder %s134, %s137
      %p146 = scmp.eq.s32.totalorder %s19, 1
      %p147 = por %p145, %p146
      %p148 = scmp.ne.s32.totalorder %s137, %s138
      %p149 = scmp.eq.s32.totalorder %s19, 0
      %p150 = por %p148, %p149
      %p151 = scmp.ne.s32.totalorder %s137, %s138
      %p152 = scmp.eq.s32.totalorder %s20, 1
      %p153 = por %p151, %p152
      %p155 = scmp.ne.s32.totalorder %s138, %s154
      %p156 = scmp.eq.s32.totalorder %s20, 0
      %p157 = por %p155, %p156
      %p158 = scmp.le.s32.totalorder 1, %s14
      %p159 = scmp.lt.s32.totalorder %s14, 3
      %p160 = pnand %p158, %p159
      %p161 = pneg %p160
      // Predicated region
      $region9: #{tpu_custom_call.1} parent=5 // pred_check
        _
      $region10: #{tpu_custom_call.1} parent=5 // pred_check_branch
        %163 = sbr.rel (%p160) target = $region12
      $region11: #{tpu_custom_call.1} parent=5 // pred_region
        %s164 = ssub.s32 %s14, 1
        // Predicated region
        $region13: #{tpu_custom_call.1} parent=11 // pred_check
          %p165 = pneg %p61
        $region14: #{tpu_custom_call.1} parent=11 // pred_check_branch
          %167 = sbr.rel (%p165) target = $region16
        $region15: #{tpu_custom_call.1} parent=11 // pred_region
          _
        $region16: #{tpu_custom_call.1} parent=11 // pred_fallthru
          _
        // Predicated region
        $region17: #{tpu_custom_call.1} parent=11 // pred_check
          %p168 = pneg %p82
        $region18: #{tpu_custom_call.1} parent=11 // pred_check_branch
          %170 = sbr.rel (%p168) target = $region20
        $region19: #{tpu_custom_call.1} parent=11 // pred_region
          _
        $region20: #{tpu_custom_call.1} parent=11 // pred_fallthru
          _
        // Predicated region
        $region21: #{tpu_custom_call.1} parent=11 // pred_check
          %p171 = pneg %p103
        $region22: #{tpu_custom_call.1} parent=11 // pred_check_branch
          %173 = sbr.rel (%p171) target = $region24
        $region23: #{tpu_custom_call.1} parent=11 // pred_region
          _
        $region24: #{tpu_custom_call.1} parent=11 // pred_fallthru
          _
        // Predicated region
        $region25: #{tpu_custom_call.1} parent=11 // pred_check
          %p174 = pneg %p124
        $region26: #{tpu_custom_call.1} parent=11 // pred_check_branch
          %176 = sbr.rel (%p174) target = $region28
        $region27: #{tpu_custom_call.1} parent=11 // pred_region
          _
        $region28: #{tpu_custom_call.1} parent=11 // pred_fallthru
          _
      $region12: #{tpu_custom_call.1} parent=5 // pred_fallthru
        _
      %p177 = scmp.lt.s32.totalorder %s14, 2
      // Predicated region
      $region29: #{tpu_custom_call.1} parent=5 // pred_check
        %p178 = pneg %p177
      $region30: #{tpu_custom_call.1} parent=5 // pred_check_branch
        %180 = sbr.rel (%p178) target = $region32
      $region31: #{tpu_custom_call.1} parent=5 // pred_region
        // Predicated region
        $region33: #{tpu_custom_call.1} parent=31 // pred_check
          %p181 = pneg %p34
        $region34: #{tpu_custom_call.1} parent=31 // pred_check_branch
          %183 = sbr.rel (%p181) target = $region36
        $region35: #{tpu_custom_call.1} parent=31 // pred_region
          %p184 = scmp.lt.s32.totalorder %s14, 1
          %s185 = scalar_select %p184, %s14, 1
          %s186 = smul.addr %s185, 8
          %s187 = scalar_lea.vmem %s0, %s186
        $region36: #{tpu_custom_call.1} parent=31 // pred_fallthru
          _
      $region32: #{tpu_custom_call.1} parent=5 // pred_fallthru
        _
      %p188 = scmp.le.s32.totalorder 1, %s14
      %p189 = scmp.lt.s32.totalorder %s14, 3
      %p190 = pnand %p188, %p189
      %p191 = pneg %p190
      // Predicated region
      $region37: #{tpu_custom_call.1} parent=5 // pred_check
        _
      $region38: #{tpu_custom_call.1} parent=5 // pred_check_branch
        %193 = sbr.rel (%p190) target = $region40
      $region39: #{tpu_custom_call.1} parent=5 // pred_region
        %s194 = ssub.s32 %s14, 1
        %p195 = scmp.lt.s32.totalorder %s19, 1
        %s196 = scalar_select %p195, %s19, 1
        %s197 = smul.addr %s196, 8
        %s198 = scalar_lea.vmem %s0, %s197
        %p199 = pneg %p40
        %p200 = pneg %p37
        %p201 = pneg %p61
        %p202 = pneg %p58
        %p203 = pneg %p82
        %p204 = pneg %p79
        %p205 = pneg %p103
        %p206 = pneg %p100
        %p207 = pneg %p124
        %p208 = pneg %p121
        %p209 = pneg %p150
        %p210 = pneg %p147
        %s211 = sand.u32 %s137, 1
        %s212 = scalar_lea.sflag [#allocation3], %s211
        %s213 = sand.u32 %s137, 1
        %s214 = smul.addr %s213, 8
        %s215 = scalar_lea.vmem [#allocation2], %s214
        %p216 = scmp.lt.s32.totalorder %s19, 1
        %s217 = scalar_select %p216, %s19, 1
        %s218 = smul.addr %s217, 8
        %s219 = scalar_lea.vmem %s0, %s218
        %v221 = vld [vmem:[%s219] sm:$0xff]
        %v222 = vpack.c.bf16 %v221, %v221
        %v223 = vld [vmem:[%s1] sm:$0xf]
        %v224 = vld [vmem:[%s1 + $0x4] sm:$0xf]
        %v225 = vld [vmem:[%s2] sm:$0x1]
        %v227 = vlaneseq
        %v228 = vshrl.u32 %v227, 7
        %v229 = vsub.s32 0, %v228
        %v230 = vrot.slane %v225, %v229
        %v234 = vunpack.c.l.b16 %v223
        %v235 = vunpack.c.l.b16 %v224
        %v236 = vpack.c.b16 %v235, %v234
        %vm238 = vcmask 130048
        %v240 = vsel %vm238, %v222, 0
        %242 = vmatprep.subr.bf16.mxu0 0
        %243 = vmatpush1.bf16.msra.mxu0 %v236
        %244 = vmatprep.subr.bf16.mxu0 0
        %245 = vmatpush1.bf16.msra.mxu0 0
        %246 = vmatprep.subr.bf16.mxu0 0
        %247 = vmatpush1.bf16.msra.mxu0 0
        %248 = vmatprep.subr.bf16.mxu0 0
        %249 = vmatpush1.bf16.msra.mxu0 0
        %250 = vmatprep.subr.bf16.mxu0 0
        %251 = vmatpush1.bf16.msra.mxu0 0
        %252 = vmatprep.subr.bf16.mxu0 0
        %253 = vmatpush1.bf16.msra.mxu0 0
        %254 = vmatprep.subr.bf16.mxu0 0
        %255 = vmatpush1.bf16.msra.mxu0 0
        %256 = vmatprep.subr.bf16.mxu0 0
        %257 = vmatpush1.bf16.msra.mxu0 0
        %258 = vmatprep.subr.bf16.mxu0 0
        %259 = vmatpush1.bf16.msra.mxu0 0
        %260 = vmatprep.subr.bf16.mxu0 0
        %261 = vmatpush1.bf16.msra.mxu0 0
        %262 = vmatprep.subr.bf16.mxu0 0
        %263 = vmatpush1.bf16.msra.mxu0 0
        %264 = vmatprep.subr.bf16.mxu0 0
        %265 = vmatpush1.bf16.msra.mxu0 0
        %266 = vmatprep.subr.bf16.mxu0 0
        %267 = vmatpush1.bf16.msra.mxu0 0
        %268 = vmatprep.subr.bf16.mxu0 0
        %269 = vmatpush1.bf16.msra.mxu0 0
        %270 = vmatprep.subr.bf16.mxu0 0
        %271 = vmatpush1.bf16.msra.mxu0 0
        %272 = vmatprep.subr.bf16.mxu0 0
        %273 = vmatpush1.bf16.msra.mxu0 0
        %274 = vmatprep.mubr.bf16.mxu0 0
        %275 = vmatmul.mubr.bf16.gmra.mrb[0].mxu0 %v240
        %v276 = vpop.f32.mrb[0].mxu0
        %v277 = vadd.f32 %v230, %v276
        %v278 = vpop.f32.mrb[0].mxu0
        %v279 = vpop.f32.mrb[0].mxu0
        %v280 = vpop.f32.mrb[0].mxu0
        %281 = vdwg.mxu0
        %v282 = vmul.f32 %v277, %v277
        %v283 = vmul.f32 %v277, %v282
        %v284 = vmul.f32 %v283, 0.044715
        %v285 = vadd.f32 %v277, %v284
        %v286 = vmul.f32 %v285, 0.7978846
        %v287 = vtanh.pop %v286
        %v288 = vadd.f32 %v287, 1.0
        %v289 = vmul.f32 %v288, 0.5
        %v290 = vmul.f32 %v277, %v289
        %v291 = vpack.c.bf16 %v290, %v290
        %v292 = vld [vmem:[%s3] sm:$0xf]
        %v293 = vld [vmem:[%s3 + $0x4] sm:$0xf]
        %v294 = vld [vmem:[%s3 + $0x8] sm:$0xf]
        %v295 = vld [vmem:[%s3 + $0xc] sm:$0xf]
        %v296 = vld [vmem:[%s4] sm:$0x1]
        %v298 = vlaneseq
        %v299 = vshrl.u32 %v298, 7
        %v300 = vsub.s32 0, %v299
        %v301 = vrot.slane %v296, %v300
        %v307 = vunpack.c.l.b16 %v292
        %v308 = vunpack.c.l.b16 %v293
        %v309 = vunpack.c.l.b16 %v294
        %v310 = vunpack.c.l.b16 %v295
        %v311 = vpack.c.b16 %v308, %v307
        %v312 = vpack.c.b16 %v310, %v309
        %vm315 = vcmask 261120
        %v317 = vsel %vm315, %v291, 0
        %319 = vmatprep.subr.bf16.mxu0 0
        %320 = vmatpush1.bf16.msra.mxu0 %v311
        %321 = vmatprep.subr.bf16.mxu0 0
        %322 = vmatpush1.bf16.msra.mxu0 %v312
        %323 = vmatprep.subr.bf16.mxu0 0
        %324 = vmatpush1.bf16.msra.mxu0 0
        %325 = vmatprep.subr.bf16.mxu0 0
        %326 = vmatpush1.bf16.msra.mxu0 0
        %327 = vmatprep.subr.bf16.mxu0 0
        %328 = vmatpush1.bf16.msra.mxu0 0
        %329 = vmatprep.subr.bf16.mxu0 0
        %330 = vmatpush1.bf16.msra.mxu0 0
        %331 = vmatprep.subr.bf16.mxu0 0
        %332 = vmatpush1.bf16.msra.mxu0 0
        %333 = vmatprep.subr.bf16.mxu0 0
        %334 = vmatpush1.bf16.msra.mxu0 0
        %335 = vmatprep.subr.bf16.mxu0 0
        %336 = vmatpush1.bf16.msra.mxu0 0
        %337 = vmatprep.subr.bf16.mxu0 0
        %338 = vmatpush1.bf16.msra.mxu0 0
        %339 = vmatprep.subr.bf16.mxu0 0
        %340 = vmatpush1.bf16.msra.mxu0 0
        %341 = vmatprep.subr.bf16.mxu0 0
        %342 = vmatpush1.bf16.msra.mxu0 0
        %343 = vmatprep.subr.bf16.mxu0 0
        %344 = vmatpush1.bf16.msra.mxu0 0
        %345 = vmatprep.subr.bf16.mxu0 0
        %346 = vmatpush1.bf16.msra.mxu0 0
        %347 = vmatprep.subr.bf16.mxu0 0
        %348 = vmatpush1.bf16.msra.mxu0 0
        %349 = vmatprep.subr.bf16.mxu0 0
        %350 = vmatpush1.bf16.msra.mxu0 0
        %351 = vmatprep.mubr.bf16.mxu0 0
        %352 = vmatmul.mubr.bf16.gmra.mrb[0].mxu0 %v317
        %v353 = vpop.f32.mrb[0].mxu0
        %v354 = vadd.f32 %v301, %v353
        %v355 = vpop.f32.mrb[0].mxu0
        %v356 = vpop.f32.mrb[0].mxu0
        %v357 = vpop.f32.mrb[0].mxu0
        %358 = vdwg.mxu0
        %359 = vst.msk [vmem:[%s215] sm:$0xff] %vm238, %v354
        %s360 = sand.u32 %s137, 1
        %s361 = scalar_lea.sflag [#allocation3], %s360
        %s362 = sand.u32 %s137, 1
        %s363 = smul.addr %s362, 8
        %s364 = scalar_lea.vmem [#allocation2], %s363
        // Predicated region
        $region41: #{tpu_custom_call.1} parent=39 // pred_check
          %p365 = pneg %p147
        $region42: #{tpu_custom_call.1} parent=39 // pred_check_branch
          %367 = sbr.rel (%p365) target = $region44
        $region43: #{tpu_custom_call.1} parent=39 // pred_region
          %s369 = ssub.s32 128, 128
          %370 = vsyncadd %s361, %s369
          %s371 = smul.addr %s19, 128
          %s372 = scalar_lea.hbm %s5, %s371
          %s374 = sshll.u32 %s364, 4
          %s375 = int_to_ptr.vmem [resolvable:$true] %s374
          %377 = dma.vmem_to_hbm [thread:$0]  %s375, 128, %s372, %s361
        $region44: #{tpu_custom_call.1} parent=39 // pred_fallthru
          _
      $region40: #{tpu_custom_call.1} parent=5 // pred_fallthru
        _
      %p378 = scmp.le.s32.totalorder 2, %s14
      // Predicated region
      $region45: #{tpu_custom_call.1} parent=5 // pred_check
        %p379 = pneg %p378
      $region46: #{tpu_custom_call.1} parent=5 // pred_check_branch
        %381 = sbr.rel (%p379) target = $region48
      $region47: #{tpu_custom_call.1} parent=5 // pred_region
        %s382 = ssub.s32 %s14, 2
        // Predicated region
        $region49: #{tpu_custom_call.1} parent=47 // pred_check
          %p383 = pneg %p153
        $region50: #{tpu_custom_call.1} parent=47 // pred_check_branch
          %385 = sbr.rel (%p383) target = $region52
        $region51: #{tpu_custom_call.1} parent=47 // pred_region
          %s386 = sand.u32 %s138, 1
          %s387 = scalar_lea.sflag [#allocation3], %s386
          %s388 = sand.u32 %s138, 1
          %s389 = smul.addr %s388, 8
          %s390 = scalar_lea.vmem [#allocation2], %s389
          %391 = dma.done %s387, 128
        $region52: #{tpu_custom_call.1} parent=47 // pred_fallthru
          _
      $region48: #{tpu_custom_call.1} parent=5 // pred_fallthru
        _
    $region6: #{tpu_custom_call.1} parent=1 // loop_footer
      %s18 = sadd.s32 1, %s14
    $region7: #{tpu_custom_call.1} parent=1 // loop_footer_branch
      %13 = sbr.rel target = $region3
    $region8: #{tpu_custom_call.1} parent=1 // loop_exit
      _
    %392 = vsyncpa [#allocation3], 1
    %s393 = scalar_lea.sflag [#allocation3], 1
    %394 = vsyncpa %s393, 1

</llo_original>
